<compile_context>
chip_gen: v7x
topology: tpu7x:2x2x1
jax: 0.10.0
libtpu: 0.0.40
codegen_flags: <defaults>
</compile_context>

<pallas_src>
import jax
import jax.numpy as jnp
from jax import lax
from jax.experimental import pallas as pl
from jax.experimental.pallas import tpu as pltpu


_CHUNK_V = 256  # MXU contraction depth on v6e/v7x; also fine (2x128) on v5e.


def ast_value_embedding_kernel(ids_ref, fused_ref, out_ref):
    TB, S = ids_ref.shape
    V, E = fused_ref.shape                       # V is the padded vocab size
    chunk = min(_CHUNK_V, V)                     # wrapper guarantees V % chunk == 0

    ids = ids_ref[...]                           # (TB, S) int32, masked positions = -1

    # Valid-token count per sentence (mask was folded into sentinel ids).
    valid = jnp.sum((ids >= 0).astype(jnp.float32), axis=1, keepdims=True)   # (TB, 1)

    # Hoisted lane-dense iota for one vocab chunk.
    iota_v = lax.broadcasted_iota(jnp.int32, (TB, chunk), 1)

    # V-chunked one-hot-count -> MXU matmul against the fused (table @ W^T) slice.
    #   counts[b, v] = sum_s [ids[b, s] == v]   (small exact integers)
    #   pooled[b, :] = counts[b, :] @ fused     (== sum of projected embeddings)
    # Counts are exact in bf16 (<= S), so the bf16 cast before the matmul is lossless;
    # accumulation stays f32.  (On v6e/v7x the counts could be accumulated directly
    # in bf16; kept f32 here so the same kernel is also optimal on v5e.)
    pooled = jnp.zeros((TB, E), dtype=jnp.float32)
    for c0 in range(0, V, chunk):
        ids_c = ids - c0                         # shift ids into this chunk's range
        c = jnp.zeros((TB, chunk), dtype=jnp.float32)
        for s in range(S):
            c = c + (iota_v == ids_c[:, s:s + 1]).astype(jnp.float32)
        pooled = pooled + jnp.dot(c.astype(fused_ref.dtype),
                                  fused_ref[c0:c0 + chunk, :],
                                  preferred_element_type=jnp.float32)

    # Masked mean: exact reciprocal of the clamped count (only TB values), then scale.
    inv = 1.0 / jnp.maximum(valid, 1e-9)
    out_ref[...] = (pooled * inv).astype(out_ref.dtype)


def _round_up(x, m):
    return ((x + m - 1) // m) * m


def ast_value_embedding(input_ids, attention_mask, table, w, *, block_b=64):
    """input_ids: (B, S) int, attention_mask: (B, S) in {0,1}, table: (V, E),
    w: (E_out, E_in) as in nn.Linear.weight.  Returns (B, E) float32."""
    B, S = input_ids.shape
    V, E = table.shape

    # Fuse Embedding + bias-free Linear offline (pooling commutes with the linear
    # projection), f32 matmul then a single cast to bf16 for the MXU operand.
    fused = (table.astype(jnp.float32) @ w.astype(jnp.float32).T).astype(jnp.bfloat16)

    # Pad the vocab so it is a whole number of chunks (padded rows are zeros and
    # are never selected because all ids < V).
    vc = min(_CHUNK_V, _round_up(V, 8))
    V_pad = _round_up(V, vc)
    if V_pad != V:
        fused = jnp.pad(fused, ((0, V_pad - V), (0, 0)))

    # Fold the {0,1} attention mask into sentinel ids: -1 never matches the vocab
    # iota, so masked tokens contribute exactly zero and the mask tensor is not
    # shipped to the kernel at all.
    # NOTE: assumes a strict {0,1} mask and 0 <= id < V (true for HF tokenizer output).
    ids = jnp.where(attention_mask > 0, input_ids.astype(jnp.int32), -1)

    # Batch tiling: pad to a sublane multiple; pick TB so the grid has >= 2 steps
    # whenever there is enough batch (lets "parallel" shard across v7x's 2 TCs).
    b8 = _round_up(B, 8)
    if b8 <= 8:
        TB = 8
    else:
        TB = min(_round_up(-(-b8 // 2), 8), max(block_b, 8))
    B_pad = _round_up(B, TB)
    ids = jnp.pad(ids, ((0, B_pad - B), (0, 0)), constant_values=-1)

    out = pl.pallas_call(
        ast_value_embedding_kernel,
        out_shape=jax.ShapeDtypeStruct((B_pad, E), jnp.float32),
        grid=(B_pad // TB,),
        in_specs=[
            pl.BlockSpec((TB, S), lambda i: (i, 0)),        # sentinel ids (batch tile)
            # Fused (table @ W^T) resident in VMEM (bf16, 128 KiB at V=512, E=128).
            # TODO(synk): for a realistic HF vocab (~50K rows, ~12.8 MiB bf16), tile V
            # on a reduction grid axis (pl.when-init accumulator) or replace the
            # one-hot matmul with a scalar-prefetch + DMA row gather; mind v7x's
            # 64 MiB VMEM / 32 MiB scoped default.
            pl.BlockSpec((V_pad, E), lambda i: (0, 0)),
        ],
        out_specs=pl.BlockSpec((TB, E), lambda i: (i, 0)),
        compiler_params=pltpu.CompilerParams(
            dimension_semantics=("parallel",)),              # batch tiles across TCs
    )(ids, fused)
    return out[:B]


if __name__ == "__main__":
    # TODO(synk): PreTrainedTokenizerFast tokenization has no Pallas equivalent;
    # start from synthetic pre-tokenized input_ids / attention_mask.
    B, S, E, V = 2, 8, 128, 512

    key = jax.random.PRNGKey(0)
    k_ids, k_tab, k_w = jax.random.split(key, 3)

    # Deterministic "tokenizer output": sentence 0 has 8 valid tokens, sentence 1 has 5.
    lengths = jnp.array([8, 5], dtype=jnp.int32)
    attention_mask = (jnp.arange(S)[None, :] < lengths[:, None]).astype(jnp.int32)
    input_ids = jax.random.randint(k_ids, (B, S), 0, V, dtype=jnp.int32)
    input_ids = input_ids * attention_mask   # pad positions -> id 0 (masked out anyway)

    # Deterministic parameters (Embedding(V, E), Linear(E, E, bias=False)).
    table = jax.random.normal(k_tab, (V, E), dtype=jnp.float32) * 0.02
    w = jax.random.normal(k_w, (E, E), dtype=jnp.float32) * (1.0 / (E ** 0.5))

    out = ast_value_embedding(input_ids, attention_mask, table, w)
    out = jax.block_until_ready(out)

    # Plain-JAX f32 reference of the PyTorch forward.
    tok = table[input_ids] @ w.T                                    # (B, S, E)
    masked = tok * attention_mask[..., None].astype(jnp.float32)
    valid = jnp.maximum(attention_mask.sum(axis=1, keepdims=True).astype(jnp.float32), 1e-9)
    ref = masked.sum(axis=1) / valid                                # (B, E)

    assert out.shape == (B, E)
    # Tolerance vs. the f32 reference: the only rounding is the single bf16 cast of
    # the fused table (counts are exact in bf16).
    assert jnp.allclose(out, ref, atol=2e-3, rtol=2e-2), "kernel/reference mismatch"

    print("KERNEL_OK")
</pallas_src>

<mosaic_0001>
module attributes {stable_mosaic.version = 11 : i64} {
  func.func @ast_value_embedding_kernel(%arg0: i32, %arg1: memref<8x8xi32, #tpu.memory_space<vmem>>, %arg2: memref<512x128xbf16, #tpu.memory_space<vmem>>, %arg3: memref<8x128xf32, #tpu.memory_space<vmem>>) attributes {dimension_semantics = [#tpu.dimension_semantics<parallel>], iteration_bounds = array<i64: 1>, scalar_prefetch = 0 : i64, scratch_operands = 0 : i64, tpu.core_type = #tpu.core_type<tc>, window_params = [{transform_indices = @transform_0, window_bounds = array<i64: 8, 8>}, {pipeline_mode = #tpu.pipeline_mode<synchronous>, transform_indices = @transform_1, window_bounds = array<i64: 512, 128>}, {transform_indices = @transform_2, window_bounds = array<i64: 8, 128>}]} {
    %c0 = arith.constant 0 : index
    %c0_0 = arith.constant 0 : index
    %0 = vector.load %arg1[%c0, %c0_0] : memref<8x8xi32, #tpu.memory_space<vmem>>, vector<8x8xi32>
    %c0_i32 = arith.constant 0 : i32
    %1 = vector.broadcast %c0_i32 : i32 to vector<8x8xi32>
    %2 = arith.cmpi sge, %0, %1 : vector<8x8xi32>
    %3 = arith.extui %2 : vector<8x8xi1> to vector<8x8xi32>
    %4 = arith.sitofp %3 : vector<8x8xi32> to vector<8x8xf32>
    %cst = arith.constant dense<0.000000e+00> : vector<8xf32>
    %5 = vector.multi_reduction <add>, %4, %cst [1] : vector<8x8xf32> to vector<8xf32>
    %6 = vector.shape_cast %5 : vector<8xf32> to vector<8x1xf32>
    %7 = tpu.iota {dimensions = array<i32: 1>} : vector<8x256xi32>
    %cst_1 = arith.constant 0.000000e+00 : f32
    %8 = vector.broadcast %cst_1 : f32 to vector<8x128xf32>
    %c0_i32_2 = arith.constant 0 : i32
    %9 = vector.broadcast %c0_i32_2 : i32 to vector<8x8xi32>
    %10 = arith.subi %0, %9 : vector<8x8xi32>
    %cst_3 = arith.constant 0.000000e+00 : f32
    %11 = vector.broadcast %cst_3 : f32 to vector<8x256xf32>
    %12 = vector.extract_strided_slice %10 {offsets = [0, 0], sizes = [8, 1], strides = [1, 1]} : vector<8x8xi32> to vector<8x1xi32>
    %13 = vector.broadcast %12 : vector<8x1xi32> to vector<8x256xi32>
    %14 = arith.cmpi eq, %7, %13 : vector<8x256xi32>
    %15 = arith.extui %14 : vector<8x256xi1> to vector<8x256xi32>
    %16 = arith.sitofp %15 : vector<8x256xi32> to vector<8x256xf32>
    %17 = arith.addf %11, %16 : vector<8x256xf32>
    %18 = vector.extract_strided_slice %10 {offsets = [0, 1], sizes = [8, 1], strides = [1, 1]} : vector<8x8xi32> to vector<8x1xi32>
    %19 = vector.broadcast %18 : vector<8x1xi32> to vector<8x256xi32>
    %20 = arith.cmpi eq, %7, %19 : vector<8x256xi32>
    %21 = arith.extui %20 : vector<8x256xi1> to vector<8x256xi32>
    %22 = arith.sitofp %21 : vector<8x256xi32> to vector<8x256xf32>
    %23 = arith.addf %17, %22 : vector<8x256xf32>
    %24 = vector.extract_strided_slice %10 {offsets = [0, 2], sizes = [8, 1], strides = [1, 1]} : vector<8x8xi32> to vector<8x1xi32>
    %25 = vector.broadcast %24 : vector<8x1xi32> to vector<8x256xi32>
    %26 = arith.cmpi eq, %7, %25 : vector<8x256xi32>
    %27 = arith.extui %26 : vector<8x256xi1> to vector<8x256xi32>
    %28 = arith.sitofp %27 : vector<8x256xi32> to vector<8x256xf32>
    %29 = arith.addf %23, %28 : vector<8x256xf32>
    %30 = vector.extract_strided_slice %10 {offsets = [0, 3], sizes = [8, 1], strides = [1, 1]} : vector<8x8xi32> to vector<8x1xi32>
    %31 = vector.broadcast %30 : vector<8x1xi32> to vector<8x256xi32>
    %32 = arith.cmpi eq, %7, %31 : vector<8x256xi32>
    %33 = arith.extui %32 : vector<8x256xi1> to vector<8x256xi32>
    %34 = arith.sitofp %33 : vector<8x256xi32> to vector<8x256xf32>
    %35 = arith.addf %29, %34 : vector<8x256xf32>
    %36 = vector.extract_strided_slice %10 {offsets = [0, 4], sizes = [8, 1], strides = [1, 1]} : vector<8x8xi32> to vector<8x1xi32>
    %37 = vector.broadcast %36 : vector<8x1xi32> to vector<8x256xi32>
    %38 = arith.cmpi eq, %7, %37 : vector<8x256xi32>
    %39 = arith.extui %38 : vector<8x256xi1> to vector<8x256xi32>
    %40 = arith.sitofp %39 : vector<8x256xi32> to vector<8x256xf32>
    %41 = arith.addf %35, %40 : vector<8x256xf32>
    %42 = vector.extract_strided_slice %10 {offsets = [0, 5], sizes = [8, 1], strides = [1, 1]} : vector<8x8xi32> to vector<8x1xi32>
    %43 = vector.broadcast %42 : vector<8x1xi32> to vector<8x256xi32>
    %44 = arith.cmpi eq, %7, %43 : vector<8x256xi32>
    %45 = arith.extui %44 : vector<8x256xi1> to vector<8x256xi32>
    %46 = arith.sitofp %45 : vector<8x256xi32> to vector<8x256xf32>
    %47 = arith.addf %41, %46 : vector<8x256xf32>
    %48 = vector.extract_strided_slice %10 {offsets = [0, 6], sizes = [8, 1], strides = [1, 1]} : vector<8x8xi32> to vector<8x1xi32>
    %49 = vector.broadcast %48 : vector<8x1xi32> to vector<8x256xi32>
    %50 = arith.cmpi eq, %7, %49 : vector<8x256xi32>
    %51 = arith.extui %50 : vector<8x256xi1> to vector<8x256xi32>
    %52 = arith.sitofp %51 : vector<8x256xi32> to vector<8x256xf32>
    %53 = arith.addf %47, %52 : vector<8x256xf32>
    %54 = vector.extract_strided_slice %10 {offsets = [0, 7], sizes = [8, 1], strides = [1, 1]} : vector<8x8xi32> to vector<8x1xi32>
    %55 = vector.broadcast %54 : vector<8x1xi32> to vector<8x256xi32>
    %56 = arith.cmpi eq, %7, %55 : vector<8x256xi32>
    %57 = arith.extui %56 : vector<8x256xi1> to vector<8x256xi32>
    %58 = arith.sitofp %57 : vector<8x256xi32> to vector<8x256xf32>
    %59 = arith.addf %53, %58 : vector<8x256xf32>
    %60 = arith.truncf %59 : vector<8x256xf32> to vector<8x256xbf16>
    %c0_4 = arith.constant 0 : index
    %c0_5 = arith.constant 0 : index
    %61 = vector.load %arg2[%c0_4, %c0_5] : memref<512x128xbf16, #tpu.memory_space<vmem>>, vector<256x128xbf16>
    %cst_6 = arith.constant dense<0.000000e+00> : vector<8x128xf32>
    %62 = tpu.matmul %60, %61, %cst_6 {dimension_numbers = #tpu.dot_dimension_numbers<[1], [0], [0], [1], [0, 0, 1, 1], [], []>} : vector<8x256xbf16>, vector<256x128xbf16>, vector<8x128xf32> -> vector<8x128xf32>
    %63 = arith.addf %8, %62 : vector<8x128xf32>
    %c256_i32 = arith.constant 256 : i32
    %64 = vector.broadcast %c256_i32 : i32 to vector<8x8xi32>
    %65 = arith.subi %0, %64 : vector<8x8xi32>
    %cst_7 = arith.constant 0.000000e+00 : f32
    %66 = vector.broadcast %cst_7 : f32 to vector<8x256xf32>
    %67 = vector.extract_strided_slice %65 {offsets = [0, 0], sizes = [8, 1], strides = [1, 1]} : vector<8x8xi32> to vector<8x1xi32>
    %68 = vector.broadcast %67 : vector<8x1xi32> to vector<8x256xi32>
    %69 = arith.cmpi eq, %7, %68 : vector<8x256xi32>
    %70 = arith.extui %69 : vector<8x256xi1> to vector<8x256xi32>
    %71 = arith.sitofp %70 : vector<8x256xi32> to vector<8x256xf32>
    %72 = arith.addf %66, %71 : vector<8x256xf32>
    %73 = vector.extract_strided_slice %65 {offsets = [0, 1], sizes = [8, 1], strides = [1, 1]} : vector<8x8xi32> to vector<8x1xi32>
    %74 = vector.broadcast %73 : vector<8x1xi32> to vector<8x256xi32>
    %75 = arith.cmpi eq, %7, %74 : vector<8x256xi32>
    %76 = arith.extui %75 : vector<8x256xi1> to vector<8x256xi32>
    %77 = arith.sitofp %76 : vector<8x256xi32> to vector<8x256xf32>
    %78 = arith.addf %72, %77 : vector<8x256xf32>
    %79 = vector.extract_strided_slice %65 {offsets = [0, 2], sizes = [8, 1], strides = [1, 1]} : vector<8x8xi32> to vector<8x1xi32>
    %80 = vector.broadcast %79 : vector<8x1xi32> to vector<8x256xi32>
    %81 = arith.cmpi eq, %7, %80 : vector<8x256xi32>
    %82 = arith.extui %81 : vector<8x256xi1> to vector<8x256xi32>
    %83 = arith.sitofp %82 : vector<8x256xi32> to vector<8x256xf32>
    %84 = arith.addf %78, %83 : vector<8x256xf32>
    %85 = vector.extract_strided_slice %65 {offsets = [0, 3], sizes = [8, 1], strides = [1, 1]} : vector<8x8xi32> to vector<8x1xi32>
    %86 = vector.broadcast %85 : vector<8x1xi32> to vector<8x256xi32>
    %87 = arith.cmpi eq, %7, %86 : vector<8x256xi32>
    %88 = arith.extui %87 : vector<8x256xi1> to vector<8x256xi32>
    %89 = arith.sitofp %88 : vector<8x256xi32> to vector<8x256xf32>
    %90 = arith.addf %84, %89 : vector<8x256xf32>
    %91 = vector.extract_strided_slice %65 {offsets = [0, 4], sizes = [8, 1], strides = [1, 1]} : vector<8x8xi32> to vector<8x1xi32>
    %92 = vector.broadcast %91 : vector<8x1xi32> to vector<8x256xi32>
    %93 = arith.cmpi eq, %7, %92 : vector<8x256xi32>
    %94 = arith.extui %93 : vector<8x256xi1> to vector<8x256xi32>
    %95 = arith.sitofp %94 : vector<8x256xi32> to vector<8x256xf32>
    %96 = arith.addf %90, %95 : vector<8x256xf32>
    %97 = vector.extract_strided_slice %65 {offsets = [0, 5], sizes = [8, 1], strides = [1, 1]} : vector<8x8xi32> to vector<8x1xi32>
    %98 = vector.broadcast %97 : vector<8x1xi32> to vector<8x256xi32>
    %99 = arith.cmpi eq, %7, %98 : vector<8x256xi32>
    %100 = arith.extui %99 : vector<8x256xi1> to vector<8x256xi32>
    %101 = arith.sitofp %100 : vector<8x256xi32> to vector<8x256xf32>
    %102 = arith.addf %96, %101 : vector<8x256xf32>
    %103 = vector.extract_strided_slice %65 {offsets = [0, 6], sizes = [8, 1], strides = [1, 1]} : vector<8x8xi32> to vector<8x1xi32>
    %104 = vector.broadcast %103 : vector<8x1xi32> to vector<8x256xi32>
    %105 = arith.cmpi eq, %7, %104 : vector<8x256xi32>
    %106 = arith.extui %105 : vector<8x256xi1> to vector<8x256xi32>
    %107 = arith.sitofp %106 : vector<8x256xi32> to vector<8x256xf32>
    %108 = arith.addf %102, %107 : vector<8x256xf32>
    %109 = vector.extract_strided_slice %65 {offsets = [0, 7], sizes = [8, 1], strides = [1, 1]} : vector<8x8xi32> to vector<8x1xi32>
    %110 = vector.broadcast %109 : vector<8x1xi32> to vector<8x256xi32>
    %111 = arith.cmpi eq, %7, %110 : vector<8x256xi32>
    %112 = arith.extui %111 : vector<8x256xi1> to vector<8x256xi32>
    %113 = arith.sitofp %112 : vector<8x256xi32> to vector<8x256xf32>
    %114 = arith.addf %108, %113 : vector<8x256xf32>
    %115 = arith.truncf %114 : vector<8x256xf32> to vector<8x256xbf16>
    %c256 = arith.constant 256 : index
    %c0_8 = arith.constant 0 : index
    %116 = vector.load %arg2[%c256, %c0_8] : memref<512x128xbf16, #tpu.memory_space<vmem>>, vector<256x128xbf16>
    %cst_9 = arith.constant dense<0.000000e+00> : vector<8x128xf32>
    %117 = tpu.matmul %115, %116, %cst_9 {dimension_numbers = #tpu.dot_dimension_numbers<[1], [0], [0], [1], [0, 0, 1, 1], [], []>} : vector<8x256xbf16>, vector<256x128xbf16>, vector<8x128xf32> -> vector<8x128xf32>
    %118 = arith.addf %63, %117 : vector<8x128xf32>
    %cst_10 = arith.constant 9.99999971E-10 : f32
    %119 = vector.broadcast %cst_10 : f32 to vector<8x1xf32>
    %120 = arith.maximumf %6, %119 : vector<8x1xf32>
    %cst_11 = arith.constant 1.000000e+00 : f32
    %121 = vector.broadcast %cst_11 : f32 to vector<8x1xf32>
    %122 = arith.divf %121, %120 : vector<8x1xf32>
    %123 = vector.broadcast %122 : vector<8x1xf32> to vector<8x128xf32>
    %124 = arith.mulf %118, %123 : vector<8x128xf32>
    %c0_12 = arith.constant 0 : index
    %c0_13 = arith.constant 0 : index
    %125 = vector.load %arg3[%c0_12, %c0_13] : memref<8x128xf32, #tpu.memory_space<vmem>>, vector<8x128xf32>
    tpu.vector_store %arg3[%c0_12, %c0_13], %124 {strides = array<i32>} : memref<8x128xf32, #tpu.memory_space<vmem>>, vector<8x128xf32>,
    return
  }
  func.func @transform_0(%arg0: i32) -> (i32, i32) {
    %c0_i32 = arith.constant 0 : i32
    %c0_i32_0 = arith.constant 0 : i32
    return %arg0, %c0_i32 : i32, i32
  }
  func.func @transform_1(%arg0: i32) -> (i32, i32) {
    %c0_i32 = arith.constant 0 : i32
    %c0_i32_0 = arith.constant 0 : i32
    %c0_i32_1 = arith.constant 0 : i32
    return %c0_i32, %c0_i32_0 : i32, i32
  }
  func.func @transform_2(%arg0: i32) -> (i32, i32) {
    %c0_i32 = arith.constant 0 : i32
    %c0_i32_0 = arith.constant 0 : i32
    return %arg0, %c0_i32 : i32, i32
  }
}

</mosaic_0001>

<llo_original>
// kernel: tpu_custom_call.1
$region0: #{tpu_custom_call.1}
  #allocation0 [shape = 'u32[]', space=smem, size = 0x4, offset = 0x4, fixed_abs, tag = 'smem constant byte address 0x4 - core index']
  #allocation1 [shape = 'u32[144,128]{1,0:T(1,128)}', space=vmem, size = 0x12000, scoped, tag = 'internal scratch']
  %s0 = inlined_call_operand.hbm [shape: s32[8,8], index: 0, kind: input, shape index: {}]
  %s1 = inlined_call_operand.hbm [shape: bf16[512,128], index: 1, kind: input, shape index: {}]
  %s2 = inlined_call_operand.hbm [shape: f32[8,128], index: 2, kind: output, shape index: {}]
  %s3 = sld [smem:[#allocation0]]
  $region26: #{tpu_custom_call.1} parent=0
    _
  %s5 = ssub.s32 1, %s3
  %s6 = scalar_select 0, %s5, %s3
  $region1: #{tpu_custom_call.1} parent=0
    #allocation2 [shape = 'u8[4096]{0}', space=vmem, size = 0x1000, scoped, tag = 'input window, operand 0, single buffered']
    #allocation3 [shape = 's32[1]{0}', space=sflag, size = 0x4, scoped, tag = 'scoped memory for tpu_custom_call.1']
    #allocation4 [shape = 's32[1]{0}', space=sflag, size = 0x4, scoped, tag = 'scoped memory for tpu_custom_call.1']
    #allocation5 [shape = 'u8[131072]{0}', space=vmem, size = 0x20000, scoped, tag = 'input window, operand 1, single buffered']
    #allocation6 [shape = 's32[1]{0}', space=sflag, size = 0x4, scoped, tag = 'scoped memory for tpu_custom_call.1']
    #allocation7 [shape = 'u8[4096]{0}', space=vmem, size = 0x1000, scoped, tag = 'output window, operand 0, single buffered']
    %7 = vsyncpa [#allocation3], 0
    %8 = vsyncpa [#allocation6], 0
    %9 = vsyncpa [#allocation4], 0
    // Predicated region
    $region2: #{tpu_custom_call.1} parent=1 // pred_check
      _
    $region3: #{tpu_custom_call.1} parent=1 // pred_check_branch
      %11 = sbr.rel (0) target = $region5
    $region4: #{tpu_custom_call.1} parent=1 // pred_region
      %s13 = ssub.s32 128, 128
      %14 = vsyncadd [#allocation3], %s13
      %s16 = sshll.u32 [#allocation2], 4
      %s17 = int_to_ptr.vmem [resolvable:$true] %s16
      %19 = dma.hbm_to_vmem [thread:$0]  %s0, 128, %s17, [#allocation3]
    $region5: #{tpu_custom_call.1} parent=1 // pred_fallthru
      _
    // Predicated region
    $region6: #{tpu_custom_call.1} parent=1 // pred_check
      _
    $region7: #{tpu_custom_call.1} parent=1 // pred_check_branch
      %21 = sbr.rel (0) target = $region9
    $region8: #{tpu_custom_call.1} parent=1 // pred_region
      %s23 = ssub.s32 4096, 4096
      %24 = vsyncadd [#allocation6], %s23
      %s25 = sshll.u32 [#allocation5], 4
      %s26 = int_to_ptr.vmem [resolvable:$true] %s25
      %31 = dma.hbm_to_vmem [thread:$0]  %s1, 4096, %s26, [#allocation6], 64, 64, 4
    $region9: #{tpu_custom_call.1} parent=1 // pred_fallthru
      _
    // Predicated region
    $region10: #{tpu_custom_call.1} parent=1 // pred_check
      _
    $region11: #{tpu_custom_call.1} parent=1 // pred_check_branch
      %33 = sbr.rel (0) target = $region13
    $region12: #{tpu_custom_call.1} parent=1 // pred_region
      %34 = dma.done [#allocation3], 128
    $region13: #{tpu_custom_call.1} parent=1 // pred_fallthru
      _
    // Predicated region
    $region14: #{tpu_custom_call.1} parent=1 // pred_check
      _
    $region15: #{tpu_custom_call.1} parent=1 // pred_check_branch
      %36 = sbr.rel (0) target = $region17
    $region16: #{tpu_custom_call.1} parent=1 // pred_region
      %37 = dma.done [#allocation6], 4096
    $region17: #{tpu_custom_call.1} parent=1 // pred_fallthru
      _
    %v39 = vld [vmem:[#allocation2] sm:$0xff]
    %vm40 = vcmp.ge.s32.totalorder %v39, 0
    %v41 = vsel %vm40, 1, 0
    %v42 = vcvt.s32.f32 %v41
    %vm43 = vcmask 64512
    %v44 = vsel %vm43, %v42, 0.0
    %45 = vadd.xlane.f32.xlu0 %v44
    %v46 = vpop.xlane.xlu0 %45
    %v47 = vlaneseq
    %v48 = vand.u32 %v47, 127
    %v49 = vadd.s32 %v48, 128
    %50 = vset.pattern.permute.xlu0 0
    %51 = vperm.xlu0 %50, %v39
    %v52 = vpop.permute.xlu0 %51
    %vm53 = vcmp.eq.s32.totalorder %v48, %v52
    %vm54 = vcmp.eq.s32.totalorder %v49, %v52
    %v55 = vsel %vm53, 1, 0
    %v56 = vsel %vm54, 1, 0
    %v57 = vcvt.s32.f32 %v55
    %v58 = vcvt.s32.f32 %v56
    %v59 = vadd.f32 %v57, 0.0
    %v60 = vadd.f32 %v58, 0.0
    %61 = vset.pattern.permute.xlu0 1
    %62 = vperm.xlu0 %61, %v39
    %v63 = vpop.permute.xlu0 %62
    %vm64 = vcmp.eq.s32.totalorder %v48, %v63
    %vm65 = vcmp.eq.s32.totalorder %v49, %v63
    %v66 = vsel %vm64, 1, 0
    %v67 = vsel %vm65, 1, 0
    %v68 = vcvt.s32.f32 %v66
    %v69 = vcvt.s32.f32 %v67
    %v70 = vadd.f32 %v59, %v68
    %v71 = vadd.f32 %v60, %v69
    %72 = vset.pattern.permute.xlu0 2
    %73 = vperm.xlu0 %72, %v39
    %v74 = vpop.permute.xlu0 %73
    %vm75 = vcmp.eq.s32.totalorder %v48, %v74
    %vm76 = vcmp.eq.s32.totalorder %v49, %v74
    %v77 = vsel %vm75, 1, 0
    %v78 = vsel %vm76, 1, 0
    %v79 = vcvt.s32.f32 %v77
    %v80 = vcvt.s32.f32 %v78
    %v81 = vadd.f32 %v70, %v79
    %v82 = vadd.f32 %v71, %v80
    %83 = vset.pattern.permute.xlu0 3
    %84 = vperm.xlu0 %83, %v39
    %v85 = vpop.permute.xlu0 %84
    %vm86 = vcmp.eq.s32.totalorder %v48, %v85
    %vm87 = vcmp.eq.s32.totalorder %v49, %v85
    %v88 = vsel %vm86, 1, 0
    %v89 = vsel %vm87, 1, 0
    %v90 = vcvt.s32.f32 %v88
    %v91 = vcvt.s32.f32 %v89
    %v92 = vadd.f32 %v81, %v90
    %v93 = vadd.f32 %v82, %v91
    %94 = vset.pattern.permute.xlu0 4
    %95 = vperm.xlu0 %94, %v39
    %v96 = vpop.permute.xlu0 %95
    %vm97 = vcmp.eq.s32.totalorder %v48, %v96
    %vm98 = vcmp.eq.s32.totalorder %v49, %v96
    %v99 = vsel %vm97, 1, 0
    %v100 = vsel %vm98, 1, 0
    %v101 = vcvt.s32.f32 %v99
    %v102 = vcvt.s32.f32 %v100
    %v103 = vadd.f32 %v92, %v101
    %v104 = vadd.f32 %v93, %v102
    %105 = vset.pattern.permute.xlu0 5
    %106 = vperm.xlu0 %105, %v39
    %v107 = vpop.permute.xlu0 %106
    %vm108 = vcmp.eq.s32.totalorder %v48, %v107
    %vm109 = vcmp.eq.s32.totalorder %v49, %v107
    %v110 = vsel %vm108, 1, 0
    %v111 = vsel %vm109, 1, 0
    %v112 = vcvt.s32.f32 %v110
    %v113 = vcvt.s32.f32 %v111
    %v114 = vadd.f32 %v103, %v112
    %v115 = vadd.f32 %v104, %v113
    %116 = vset.pattern.permute.xlu0 6
    %117 = vperm.xlu0 %116, %v39
    %v118 = vpop.permute.xlu0 %117
    %vm119 = vcmp.eq.s32.totalorder %v48, %v118
    %vm120 = vcmp.eq.s32.totalorder %v49, %v118
    %v121 = vsel %vm119, 1, 0
    %v122 = vsel %vm120, 1, 0
    %v123 = vcvt.s32.f32 %v121
    %v124 = vcvt.s32.f32 %v122
    %v125 = vadd.f32 %v114, %v123
    %v126 = vadd.f32 %v115, %v124
    %127 = vset.pattern.permute.xlu0 7
    %128 = vperm.xlu0 %127, %v39
    %v129 = vpop.permute.xlu0 %128
    %vm130 = vcmp.eq.s32.totalorder %v48, %v129
    %vm131 = vcmp.eq.s32.totalorder %v49, %v129
    %v132 = vsel %vm130, 1, 0
    %v133 = vsel %vm131, 1, 0
    %v134 = vcvt.s32.f32 %v132
    %v135 = vcvt.s32.f32 %v133
    %v136 = vadd.f32 %v125, %v134
    %v137 = vadd.f32 %v126, %v135
    %v138 = vpack.c.bf16 %v136, %v136
    %v139 = vpack.c.bf16 %v137, %v137
    %v140 = vld [vmem:[#allocation5] sm:$0xf]
    %v141 = vld [vmem:[#allocation5 + $0x4] sm:$0xf]
    %v142 = vld [vmem:[#allocation5 + $0x8] sm:$0xf]
    %v143 = vld [vmem:[#allocation5 + $0xc] sm:$0xf]
    %v144 = vld [vmem:[#allocation5 + $0x10] sm:$0xf]
    %v145 = vld [vmem:[#allocation5 + $0x14] sm:$0xf]
    %v146 = vld [vmem:[#allocation5 + $0x18] sm:$0xf]
    %v147 = vld [vmem:[#allocation5 + $0x1c] sm:$0xf]
    %v148 = vld [vmem:[#allocation5 + $0x20] sm:$0xf]
    %v149 = vld [vmem:[#allocation5 + $0x24] sm:$0xf]
    %v150 = vld [vmem:[#allocation5 + $0x28] sm:$0xf]
    %v151 = vld [vmem:[#allocation5 + $0x2c] sm:$0xf]
    %v152 = vld [vmem:[#allocation5 + $0x30] sm:$0xf]
    %v153 = vld [vmem:[#allocation5 + $0x34] sm:$0xf]
    %v154 = vld [vmem:[#allocation5 + $0x38] sm:$0xf]
    %v155 = vld [vmem:[#allocation5 + $0x3c] sm:$0xf]
    %v156 = vld [vmem:[#allocation5 + $0x40] sm:$0xf]
    %v157 = vld [vmem:[#allocation5 + $0x44] sm:$0xf]
    %v158 = vld [vmem:[#allocation5 + $0x48] sm:$0xf]
    %v159 = vld [vmem:[#allocation5 + $0x4c] sm:$0xf]
    %v160 = vld [vmem:[#allocation5 + $0x50] sm:$0xf]
    %v161 = vld [vmem:[#allocation5 + $0x54] sm:$0xf]
    %v162 = vld [vmem:[#allocation5 + $0x58] sm:$0xf]
    %v163 = vld [vmem:[#allocation5 + $0x5c] sm:$0xf]
    %v164 = vld [vmem:[#allocation5 + $0x60] sm:$0xf]
    %v165 = vld [vmem:[#allocation5 + $0x64] sm:$0xf]
    %v166 = vld [vmem:[#allocation5 + $0x68] sm:$0xf]
    %v167 = vld [vmem:[#allocation5 + $0x6c] sm:$0xf]
    %v168 = vld [vmem:[#allocation5 + $0x70] sm:$0xf]
    %v169 = vld [vmem:[#allocation5 + $0x74] sm:$0xf]
    %v170 = vld [vmem:[#allocation5 + $0x78] sm:$0xf]
    %v171 = vld [vmem:[#allocation5 + $0x7c] sm:$0xf]
    %v172 = vsub.s32 %v39, 256
    %173 = vset.pattern.permute.xlu0 0
    %174 = vperm.xlu0 %173, %v172
    %v175 = vpop.permute.xlu0 %174
    %vm176 = vcmp.eq.s32.totalorder %v48, %v175
    %vm177 = vcmp.eq.s32.totalorder %v49, %v175
    %v178 = vsel %vm176, 1, 0
    %v179 = vsel %vm177, 1, 0
    %v180 = vcvt.s32.f32 %v178
    %v181 = vcvt.s32.f32 %v179
    %v182 = vadd.f32 %v180, 0.0
    %v183 = vadd.f32 %v181, 0.0
    %184 = vset.pattern.permute.xlu0 1
    %185 = vperm.xlu0 %184, %v172
    %v186 = vpop.permute.xlu0 %185
    %vm187 = vcmp.eq.s32.totalorder %v48, %v186
    %vm188 = vcmp.eq.s32.totalorder %v49, %v186
    %v189 = vsel %vm187, 1, 0
    %v190 = vsel %vm188, 1, 0
    %v191 = vcvt.s32.f32 %v189
    %v192 = vcvt.s32.f32 %v190
    %v193 = vadd.f32 %v182, %v191
    %v194 = vadd.f32 %v183, %v192
    %195 = vset.pattern.permute.xlu0 2
    %196 = vperm.xlu0 %195, %v172
    %v197 = vpop.permute.xlu0 %196
    %vm198 = vcmp.eq.s32.totalorder %v48, %v197
    %vm199 = vcmp.eq.s32.totalorder %v49, %v197
    %v200 = vsel %vm198, 1, 0
    %v201 = vsel %vm199, 1, 0
    %v202 = vcvt.s32.f32 %v200
    %v203 = vcvt.s32.f32 %v201
    %v204 = vadd.f32 %v193, %v202
    %v205 = vadd.f32 %v194, %v203
    %206 = vset.pattern.permute.xlu0 3
    %207 = vperm.xlu0 %206, %v172
    %v208 = vpop.permute.xlu0 %207
    %vm209 = vcmp.eq.s32.totalorder %v48, %v208
    %vm210 = vcmp.eq.s32.totalorder %v49, %v208
    %v211 = vsel %vm209, 1, 0
    %v212 = vsel %vm210, 1, 0
    %v213 = vcvt.s32.f32 %v211
    %v214 = vcvt.s32.f32 %v212
    %v215 = vadd.f32 %v204, %v213
    %v216 = vadd.f32 %v205, %v214
    %217 = vset.pattern.permute.xlu0 4
    %218 = vperm.xlu0 %217, %v172
    %v219 = vpop.permute.xlu0 %218
    %vm220 = vcmp.eq.s32.totalorder %v48, %v219
    %vm221 = vcmp.eq.s32.totalorder %v49, %v219
    %v222 = vsel %vm220, 1, 0
    %v223 = vsel %vm221, 1, 0
    %v224 = vcvt.s32.f32 %v222
    %v225 = vcvt.s32.f32 %v223
    %v226 = vadd.f32 %v215, %v224
    %v227 = vadd.f32 %v216, %v225
    %228 = vset.pattern.permute.xlu0 5
    %229 = vperm.xlu0 %228, %v172
    %v230 = vpop.permute.xlu0 %229
    %vm231 = vcmp.eq.s32.totalorder %v48, %v230
    %vm232 = vcmp.eq.s32.totalorder %v49, %v230
    %v233 = vsel %vm231, 1, 0
    %v234 = vsel %vm232, 1, 0
    %v235 = vcvt.s32.f32 %v233
    %v236 = vcvt.s32.f32 %v234
    %v237 = vadd.f32 %v226, %v235
    %v238 = vadd.f32 %v227, %v236
    %239 = vset.pattern.permute.xlu0 6
    %240 = vperm.xlu0 %239, %v172
    %v241 = vpop.permute.xlu0 %240
    %vm242 = vcmp.eq.s32.totalorder %v48, %v241
    %vm243 = vcmp.eq.s32.totalorder %v49, %v241
    %v244 = vsel %vm242, 1, 0
    %v245 = vsel %vm243, 1, 0
    %v246 = vcvt.s32.f32 %v244
    %v247 = vcvt.s32.f32 %v245
    %v248 = vadd.f32 %v237, %v246
    %v249 = vadd.f32 %v238, %v247
    %250 = vset.pattern.permute.xlu0 7
    %251 = vperm.xlu0 %250, %v172
    %v252 = vpop.permute.xlu0 %251
    %vm253 = vcmp.eq.s32.totalorder %v48, %v252
    %vm254 = vcmp.eq.s32.totalorder %v49, %v252
    %v255 = vsel %vm253, 1, 0
    %v256 = vsel %vm254, 1, 0
    %v257 = vcvt.s32.f32 %v255
    %v258 = vcvt.s32.f32 %v256
    %v259 = vadd.f32 %v248, %v257
    %v260 = vadd.f32 %v249, %v258
    %v261 = vpack.c.bf16 %v259, %v259
    %v262 = vpack.c.bf16 %v260, %v260
    %v263 = vld [vmem:[#allocation5 + $0x80] sm:$0xf]
    %v264 = vld [vmem:[#allocation5 + $0x84] sm:$0xf]
    %v265 = vld [vmem:[#allocation5 + $0x88] sm:$0xf]
    %v266 = vld [vmem:[#allocation5 + $0x8c] sm:$0xf]
    %v267 = vld [vmem:[#allocation5 + $0x90] sm:$0xf]
    %v268 = vld [vmem:[#allocation5 + $0x94] sm:$0xf]
    %v269 = vld [vmem:[#allocation5 + $0x98] sm:$0xf]
    %v270 = vld [vmem:[#allocation5 + $0x9c] sm:$0xf]
    %v271 = vld [vmem:[#allocation5 + $0xa0] sm:$0xf]
    %v272 = vld [vmem:[#allocation5 + $0xa4] sm:$0xf]
    %v273 = vld [vmem:[#allocation5 + $0xa8] sm:$0xf]
    %v274 = vld [vmem:[#allocation5 + $0xac] sm:$0xf]
    %v275 = vld [vmem:[#allocation5 + $0xb0] sm:$0xf]
    %v276 = vld [vmem:[#allocation5 + $0xb4] sm:$0xf]
    %v277 = vld [vmem:[#allocation5 + $0xb8] sm:$0xf]
    %v278 = vld [vmem:[#allocation5 + $0xbc] sm:$0xf]
    %v279 = vld [vmem:[#allocation5 + $0xc0] sm:$0xf]
    %v280 = vld [vmem:[#allocation5 + $0xc4] sm:$0xf]
    %v281 = vld [vmem:[#allocation5 + $0xc8] sm:$0xf]
    %v282 = vld [vmem:[#allocation5 + $0xcc] sm:$0xf]
    %v283 = vld [vmem:[#allocation5 + $0xd0] sm:$0xf]
    %v284 = vld [vmem:[#allocation5 + $0xd4] sm:$0xf]
    %v285 = vld [vmem:[#allocation5 + $0xd8] sm:$0xf]
    %v286 = vld [vmem:[#allocation5 + $0xdc] sm:$0xf]
    %v287 = vld [vmem:[#allocation5 + $0xe0] sm:$0xf]
    %v288 = vld [vmem:[#allocation5 + $0xe4] sm:$0xf]
    %v289 = vld [vmem:[#allocation5 + $0xe8] sm:$0xf]
    %v290 = vld [vmem:[#allocation5 + $0xec] sm:$0xf]
    %v291 = vld [vmem:[#allocation5 + $0xf0] sm:$0xf]
    %v292 = vld [vmem:[#allocation5 + $0xf4] sm:$0xf]
    %v293 = vld [vmem:[#allocation5 + $0xf8] sm:$0xf]
    %v294 = vld [vmem:[#allocation5 + $0xfc] sm:$0xf]
    %v327 = vunpack.c.l.b16 %v263
    %v328 = vunpack.c.l.b16 %v264
    %v329 = vunpack.c.l.b16 %v265
    %v330 = vunpack.c.l.b16 %v266
    %v331 = vunpack.c.l.b16 %v267
    %v332 = vunpack.c.l.b16 %v268
    %v333 = vunpack.c.l.b16 %v269
    %v334 = vunpack.c.l.b16 %v270
    %v335 = vunpack.c.l.b16 %v271
    %v336 = vunpack.c.l.b16 %v272
    %v337 = vunpack.c.l.b16 %v273
    %v338 = vunpack.c.l.b16 %v274
    %v339 = vunpack.c.l.b16 %v275
    %v340 = vunpack.c.l.b16 %v276
    %v341 = vunpack.c.l.b16 %v277
    %v342 = vunpack.c.l.b16 %v278
    %v343 = vunpack.c.l.b16 %v279
    %v344 = vunpack.c.l.b16 %v280
    %v345 = vunpack.c.l.b16 %v281
    %v346 = vunpack.c.l.b16 %v282
    %v347 = vunpack.c.l.b16 %v283
    %v348 = vunpack.c.l.b16 %v284
    %v349 = vunpack.c.l.b16 %v285
    %v350 = vunpack.c.l.b16 %v286
    %v351 = vunpack.c.l.b16 %v287
    %v352 = vunpack.c.l.b16 %v288
    %v353 = vunpack.c.l.b16 %v289
    %v354 = vunpack.c.l.b16 %v290
    %v355 = vunpack.c.l.b16 %v291
    %v356 = vunpack.c.l.b16 %v292
    %v357 = vunpack.c.l.b16 %v293
    %v358 = vunpack.c.l.b16 %v294
    %v359 = vpack.c.b16 %v328, %v327
    %v360 = vpack.c.b16 %v330, %v329
    %v361 = vpack.c.b16 %v332, %v331
    %v362 = vpack.c.b16 %v334, %v333
    %v363 = vpack.c.b16 %v336, %v335
    %v364 = vpack.c.b16 %v338, %v337
    %v365 = vpack.c.b16 %v340, %v339
    %v366 = vpack.c.b16 %v342, %v341
    %v367 = vpack.c.b16 %v344, %v343
    %v368 = vpack.c.b16 %v346, %v345
    %v369 = vpack.c.b16 %v348, %v347
    %v370 = vpack.c.b16 %v350, %v349
    %v371 = vpack.c.b16 %v352, %v351
    %v372 = vpack.c.b16 %v354, %v353
    %v373 = vpack.c.b16 %v356, %v355
    %v374 = vpack.c.b16 %v358, %v357
    %391 = vmatprep.subr.bf16.mxu0 0
    %392 = vmatpush1.bf16.msra.mxu0 %v359
    %393 = vmatprep.subr.bf16.mxu0 0
    %394 = vmatpush1.bf16.msra.mxu0 %v360
    %395 = vmatprep.subr.bf16.mxu0 0
    %396 = vmatpush1.bf16.msra.mxu0 %v361
    %397 = vmatprep.subr.bf16.mxu0 0
    %398 = vmatpush1.bf16.msra.mxu0 %v362
    %399 = vmatprep.subr.bf16.mxu0 0
    %400 = vmatpush1.bf16.msra.mxu0 %v363
    %401 = vmatprep.subr.bf16.mxu0 0
    %402 = vmatpush1.bf16.msra.mxu0 %v364
    %403 = vmatprep.subr.bf16.mxu0 0
    %404 = vmatpush1.bf16.msra.mxu0 %v365
    %405 = vmatprep.subr.bf16.mxu0 0
    %406 = vmatpush1.bf16.msra.mxu0 %v366
    %407 = vmatprep.subr.bf16.mxu0 0
    %408 = vmatpush1.bf16.msra.mxu0 %v367
    %409 = vmatprep.subr.bf16.mxu0 0
    %410 = vmatpush1.bf16.msra.mxu0 %v368
    %411 = vmatprep.subr.bf16.mxu0 0
    %412 = vmatpush1.bf16.msra.mxu0 %v369
    %413 = vmatprep.subr.bf16.mxu0 0
    %414 = vmatpush1.bf16.msra.mxu0 %v370
    %415 = vmatprep.subr.bf16.mxu0 0
    %416 = vmatpush1.bf16.msra.mxu0 %v371
    %417 = vmatprep.subr.bf16.mxu0 0
    %418 = vmatpush1.bf16.msra.mxu0 %v372
    %419 = vmatprep.subr.bf16.mxu0 0
    %420 = vmatpush1.bf16.msra.mxu0 %v373
    %421 = vmatprep.subr.bf16.mxu0 0
    %422 = vmatpush1.bf16.msra.mxu0 %v374
    %423 = vmatprep.mubr.bf16.mxu0 %v262
    %424 = vmatmul.mubr.bf16.gmra.mrb[0].mxu0 %v261
    %v425 = vpop.f32.mrb[0].mxu0
    %v426 = vadd.f32 0.0, %v425
    %v427 = vpop.f32.mrb[0].mxu0
    %v428 = vpop.f32.mrb[0].mxu0
    %v429 = vpop.f32.mrb[0].mxu0
    %430 = vdwg.mxu0
    %v463 = vunpack.c.l.b16 %v140
    %v464 = vunpack.c.l.b16 %v141
    %v465 = vunpack.c.l.b16 %v142
    %v466 = vunpack.c.l.b16 %v143
    %v467 = vunpack.c.l.b16 %v144
    %v468 = vunpack.c.l.b16 %v145
    %v469 = vunpack.c.l.b16 %v146
    %v470 = vunpack.c.l.b16 %v147
    %v471 = vunpack.c.l.b16 %v148
    %v472 = vunpack.c.l.b16 %v149
    %v473 = vunpack.c.l.b16 %v150
    %v474 = vunpack.c.l.b16 %v151
    %v475 = vunpack.c.l.b16 %v152
    %v476 = vunpack.c.l.b16 %v153
    %v477 = vunpack.c.l.b16 %v154
    %v478 = vunpack.c.l.b16 %v155
    %v479 = vunpack.c.l.b16 %v156
    %v480 = vunpack.c.l.b16 %v157
    %v481 = vunpack.c.l.b16 %v158
    %v482 = vunpack.c.l.b16 %v159
    %v483 = vunpack.c.l.b16 %v160
    %v484 = vunpack.c.l.b16 %v161
    %v485 = vunpack.c.l.b16 %v162
    %v486 = vunpack.c.l.b16 %v163
    %v487 = vunpack.c.l.b16 %v164
    %v488 = vunpack.c.l.b16 %v165
    %v489 = vunpack.c.l.b16 %v166
    %v490 = vunpack.c.l.b16 %v167
    %v491 = vunpack.c.l.b16 %v168
    %v492 = vunpack.c.l.b16 %v169
    %v493 = vunpack.c.l.b16 %v170
    %v494 = vunpack.c.l.b16 %v171
    %v495 = vpack.c.b16 %v464, %v463
    %v496 = vpack.c.b16 %v466, %v465
    %v497 = vpack.c.b16 %v468, %v467
    %v498 = vpack.c.b16 %v470, %v469
    %v499 = vpack.c.b16 %v472, %v471
    %v500 = vpack.c.b16 %v474, %v473
    %v501 = vpack.c.b16 %v476, %v475
    %v502 = vpack.c.b16 %v478, %v477
    %v503 = vpack.c.b16 %v480, %v479
    %v504 = vpack.c.b16 %v482, %v481
    %v505 = vpack.c.b16 %v484, %v483
    %v506 = vpack.c.b16 %v486, %v485
    %v507 = vpack.c.b16 %v488, %v487
    %v508 = vpack.c.b16 %v490, %v489
    %v509 = vpack.c.b16 %v492, %v491
    %v510 = vpack.c.b16 %v494, %v493
    %527 = vmatprep.subr.bf16.mxu0 0
    %528 = vmatpush1.bf16.msra.mxu0 %v495
    %529 = vmatprep.subr.bf16.mxu0 0
    %530 = vmatpush1.bf16.msra.mxu0 %v496
    %531 = vmatprep.subr.bf16.mxu0 0
    %532 = vmatpush1.bf16.msra.mxu0 %v497
    %533 = vmatprep.subr.bf16.mxu0 0
    %534 = vmatpush1.bf16.msra.mxu0 %v498
    %535 = vmatprep.subr.bf16.mxu0 0
    %536 = vmatpush1.bf16.msra.mxu0 %v499
    %537 = vmatprep.subr.bf16.mxu0 0
    %538 = vmatpush1.bf16.msra.mxu0 %v500
    %539 = vmatprep.subr.bf16.mxu0 0
    %540 = vmatpush1.bf16.msra.mxu0 %v501
    %541 = vmatprep.subr.bf16.mxu0 0
    %542 = vmatpush1.bf16.msra.mxu0 %v502
    %543 = vmatprep.subr.bf16.mxu0 0
    %544 = vmatpush1.bf16.msra.mxu0 %v503
    %545 = vmatprep.subr.bf16.mxu0 0
    %546 = vmatpush1.bf16.msra.mxu0 %v504
    %547 = vmatprep.subr.bf16.mxu0 0
    %548 = vmatpush1.bf16.msra.mxu0 %v505
    %549 = vmatprep.subr.bf16.mxu0 0
    %550 = vmatpush1.bf16.msra.mxu0 %v506
    %551 = vmatprep.subr.bf16.mxu0 0
    %552 = vmatpush1.bf16.msra.mxu0 %v507
    %553 = vmatprep.subr.bf16.mxu0 0
    %554 = vmatpush1.bf16.msra.mxu0 %v508
    %555 = vmatprep.subr.bf16.mxu0 0
    %556 = vmatpush1.bf16.msra.mxu0 %v509
    %557 = vmatprep.subr.bf16.mxu0 0
    %558 = vmatpush1.bf16.msra.mxu0 %v510
    %559 = vmatprep.mubr.bf16.mxu0 %v139
    %560 = vmatmul.mubr.bf16.gmra.mrb[0].mxu0 %v138
    %v561 = vpop.f32.mrb[0].mxu0
    %v562 = vadd.f32 %v426, %v561
    %v563 = vpop.f32.mrb[0].mxu0
    %v564 = vpop.f32.mrb[0].mxu0
    %v565 = vpop.f32.mrb[0].mxu0
    %566 = vdwg.mxu0
    %v567 = vmax.f32 %v46, 1e-09
    %v568 = vrcp.pop %v567
    %v569 = vmul.f32 1.0, %v568
    %v570 = vmul.f32 %v562, %v569
    %571 = vst [vmem:[#allocation7] sm:$0xff] %v570
    // Predicated region
    $region18: #{tpu_custom_call.1} parent=1 // pred_check
      _
    $region19: #{tpu_custom_call.1} parent=1 // pred_check_branch
      %573 = sbr.rel (0) target = $region21
    $region20: #{tpu_custom_call.1} parent=1 // pred_region
      %s575 = ssub.s32 128, 128
      %576 = vsyncadd [#allocation4], %s575
      %s578 = sshll.u32 [#allocation7], 4
      %s579 = int_to_ptr.vmem [resolvable:$true] %s578
      %581 = dma.vmem_to_hbm [thread:$0]  %s579, 128, %s2, [#allocation4]
    $region21: #{tpu_custom_call.1} parent=1 // pred_fallthru
      _
    // Predicated region
    $region22: #{tpu_custom_call.1} parent=1 // pred_check
      _
    $region23: #{tpu_custom_call.1} parent=1 // pred_check_branch
      %583 = sbr.rel (0) target = $region25
    $region24: #{tpu_custom_call.1} parent=1 // pred_region
      %584 = dma.done [#allocation4], 128
    $region25: #{tpu_custom_call.1} parent=1 // pred_fallthru
      _
    %585 = vsyncpa [#allocation3], 1
    %586 = vsyncpa [#allocation6], 1
    %587 = vsyncpa [#allocation4], 1

</llo_original>
